<compile_context>
chip_gen: v5e
topology: v5e:2x2
jax: 0.10.0
libtpu: 0.0.40
codegen_flags: <defaults>
</compile_context>

<pallas_src>
import functools
from typing import List, NamedTuple, Tuple

import jax
import jax.numpy as jnp
from jax.experimental import pallas as pl
from jax.experimental.pallas import tpu as pltpu


def _round_up(x: int, m: int) -> int:
    return (x + m - 1) // m * m


class _LayerMeta(NamedTuple):
    kind: str      # "dense" | "split"
    act: bool      # SiLU after this layer?
    half_in: int   # input half-width (only used when kind == "split")


# --------------------------------- kernel ---------------------------------

def _mlp_srsi_kernel(*refs, meta: Tuple[_LayerMeta, ...], compute_dtype):
    """Fused trunk + (sr|si) leaf forward for one batch tile.

    refs = (x_ref, w_0, b_0, ..., w_{L-1}, b_{L-1}, o_ref)
      x_ref : [TB, F]            unpadded input tile
      w_l   : [Din_l, Dout_l]    ("dense") or [2, I_l, O_l] ("split"), compute dtype
      b_l   : [1, Wout_l]        float32
      o_ref : [TB, W_store]      lane-dense (W_store is a multiple of 128)

    Matmuls run on the MXU in `compute_dtype` with f32 accumulation; bias add and
    SiLU stay in f32.  Zero padding is self-consistent (zero weight rows/cols, zero
    bias, silu(0)=0), so padded lanes stay exactly 0 and no masking is needed.
    """
    x_ref, o_ref = refs[0], refs[-1]
    prm = refs[1:-1]

    h = x_ref[...].astype(compute_dtype)
    out = None
    for li, lm in enumerate(meta):                        # static unroll over layers
        w_ref, b_ref = prm[2 * li], prm[2 * li + 1]
        if lm.kind == "split":                            # sr/si halves: two half-size dots
            i = lm.half_in
            a0 = jnp.dot(h[:, :i], w_ref[0], preferred_element_type=jnp.float32)
            a1 = jnp.dot(h[:, i:], w_ref[1], preferred_element_type=jnp.float32)
            acc = jnp.concatenate([a0, a1], axis=-1)
        else:
            acc = jnp.dot(h, w_ref[...], preferred_element_type=jnp.float32)
        acc = acc + b_ref[...]                            # f32 bias add
        if lm.act:
            acc = acc * jax.nn.sigmoid(acc)               # SiLU in f32 (v5e-safe)
        if li + 1 < len(meta):
            h = acc.astype(compute_dtype)                 # re-quantize for next MXU pass
        else:
            out = acc
    o_ref[...] = out.astype(o_ref.dtype)                  # single lane-dense store


# ---------------- parameter construction (deterministic, in-script) ----------------

def _init_linear(key, fan_in: int, fan_out: int):
    kw, kb = jax.random.split(key)
    std = (2.0 / fan_in) ** 0.5                       # kaiming_normal_, fan_in, relu
    w = std * jax.random.normal(kw, (fan_in, fan_out), jnp.float32)
    bound = 1.0 / (fan_in ** 0.5)                     # PyTorch default Linear bias init
    b = jax.random.uniform(kb, (1, fan_out), jnp.float32, -bound, bound)
    return w, b


def _build_mlp_params(key, in_f: int, out_f: int, hidden: List[int]):
    """Matches MLP(in_f, out_f, hidden): hidden Linear+SiLU layers, then out_layer."""
    dims = [in_f] + list(hidden) + [out_f]
    keys = jax.random.split(key, len(dims) - 1)
    return [_init_linear(k, din, dout) for k, din, dout in zip(keys, dims[:-1], dims[1:])]


def build_mlp_srsi_params(key, in_features, out_features, trunk_layers, leaf_layers):
    k_t, k_sr, k_si = jax.random.split(key, 3)
    trunk = _build_mlp_params(k_t, in_features, trunk_layers[-1], trunk_layers[:-1])
    leaf_sr = _build_mlp_params(k_sr, trunk_layers[-1], out_features, leaf_layers)
    leaf_si = _build_mlp_params(k_si, trunk_layers[-1], out_features, leaf_layers)
    return trunk, leaf_sr, leaf_si


# ---------------- leaf fusion + ragged per-layer packing ----------------

def fuse_and_pack_params(trunk_params, sr_params, si_params, *, param_dtype=jnp.bfloat16):
    """Fuse leaf_sr/leaf_si and pad every layer only to its own 128-lane width.

    Weights are packed in `param_dtype` (the MXU operand dtype), biases in f32.
    Returns a dict consumed by mlp_srsi_forward.
    """
    assert len(sr_params) == len(si_params) >= 1 and len(trunk_params) >= 1
    out_features = sr_params[-1][0].shape[1]

    def pad2(a, rows, cols):
        return jnp.pad(a, ((0, rows - a.shape[0]), (0, cols - a.shape[1])))

    weights, biases, meta = [], [], []

    # ---- trunk: plain dense layers, ragged per-layer padding ----
    prev_w = trunk_params[0][0].shape[0]              # == in_features; x stays unpadded
    for li, (w, b) in enumerate(trunk_params):
        dout_p = _round_up(w.shape[1], 128)
        weights.append(pad2(w, prev_w, dout_p).astype(param_dtype))
        biases.append(pad2(b, 1, dout_p).astype(jnp.float32))
        meta.append(_LayerMeta("dense", li < len(trunk_params) - 1, 0))
        prev_w = dout_p

    # ---- fused sr/si leaves ----
    n_leaf = len(sr_params)
    hidden_ws = [w.shape[1] for (w, _) in sr_params[:-1]]
    packed_leaf = all(2 * hw <= 128 for hw in hidden_ws)  # both halves fit one lane tile

    if packed_leaf:
        # Narrow leaves: hstack / block-diagonal fusion.  The structural zeros are
        # subsumed by the mandatory 128-lane padding and the final output comes out
        # already contiguous as [sr | si].
        for li, ((wsr, bsr), (wsi, bsi)) in enumerate(zip(sr_params, si_params)):
            if li == 0:
                w = jnp.concatenate([wsr, wsi], axis=1)
            else:
                w = jnp.concatenate(
                    [jnp.concatenate([wsr, jnp.zeros_like(wsi)], axis=1),
                     jnp.concatenate([jnp.zeros_like(wsr), wsi], axis=1)], axis=0)
            b = jnp.concatenate([bsr, bsi], axis=1)
            dout_p = _round_up(w.shape[1], 128)
            weights.append(pad2(w, prev_w, dout_p).astype(param_dtype))
            biases.append(pad2(b, 1, dout_p).astype(jnp.float32))
            meta.append(_LayerMeta("dense", li < n_leaf - 1, 0))
            prev_w = dout_p
    else:
        # Wide leaves: keep sr / si as individually 128-aligned halves so hidden
        # layers run as two half-size dots (no 50%-zero block-diagonal matmul).
        (wsr, bsr), (wsi, bsi) = sr_params[0], si_params[0]
        o_p = _round_up(wsr.shape[1], 128)
        weights.append(jnp.concatenate([pad2(wsr, prev_w, o_p),
                                        pad2(wsi, prev_w, o_p)], axis=1).astype(param_dtype))
        biases.append(jnp.concatenate([pad2(bsr, 1, o_p),
                                       pad2(bsi, 1, o_p)], axis=1).astype(jnp.float32))
        meta.append(_LayerMeta("dense", True, 0))
        half = o_p
        for li in range(1, n_leaf - 1):
            (wsr, bsr), (wsi, bsi) = sr_params[li], si_params[li]
            o_p = _round_up(wsr.shape[1], 128)
            weights.append(jnp.stack([pad2(wsr, half, o_p),
                                      pad2(wsi, half, o_p)]).astype(param_dtype))
            biases.append(jnp.concatenate([pad2(bsr, 1, o_p),
                                           pad2(bsi, 1, o_p)], axis=1).astype(jnp.float32))
            meta.append(_LayerMeta("split", True, half))
            half = o_p
        # Fused out_layer -> contiguous [sr | si] columns (single lane-dense store).
        # TODO(synk): for out_features > 64 a halves-aligned final layer would halve its MXU work.
        (wsr, bsr), (wsi, bsi) = sr_params[-1], si_params[-1]
        w_out_p = _round_up(2 * out_features, 128)
        top = pad2(jnp.concatenate([wsr, jnp.zeros_like(wsi)], axis=1), half, w_out_p)
        bot = pad2(jnp.concatenate([jnp.zeros_like(wsr), wsi], axis=1), half, w_out_p)
        weights.append(jnp.concatenate([top, bot], axis=0).astype(param_dtype))
        biases.append(pad2(jnp.concatenate([bsr, bsi], axis=1), 1, w_out_p).astype(jnp.float32))
        meta.append(_LayerMeta("dense", False, 0))

    return dict(weights=weights, biases=biases, meta=tuple(meta),
                store_width=int(weights[-1].shape[-1]), out_width=2 * out_features)


# --------------------------------- wrapper ---------------------------------

def mlp_srsi_forward(x, packed, *, block_b: int = 1024, single_buffer_weights: bool = True):
    weights: List = packed["weights"]
    biases: List = packed["biases"]
    meta: Tuple[_LayerMeta, ...] = packed["meta"]
    store_width: int = packed["store_width"]
    out_width: int = packed["out_width"]

    B, F = x.shape
    assert F == weights[0].shape[0], "x feature width does not match packed params"
    compute_dtype = weights[0].dtype               # MXU operand dtype == packing dtype

    # Batch tile: big enough to amortize the ~0.35us/step pipeline overhead, and for
    # large B split so the grid has >=2 steps (both v7x TensorCores get work).
    bb = max(8, (block_b // 8) * 8)
    if B <= 16:
        tb = B
    else:
        tb = max(8, min(bb, _round_up(pl.cdiv(B, 2), 8)))
    grid = (pl.cdiv(B, tb),)

    kernel = functools.partial(_mlp_srsi_kernel, meta=meta, compute_dtype=compute_dtype)

    # VMEM budget: resident weights/biases (x2 in case double-buffered), pipelined
    # x/out tiles, a few f32 activation temporaries, plus headroom.
    nbytes = lambda a: int(a.size) * a.dtype.itemsize
    max_act = max([F] + [b.shape[-1] for b in biases])
    need = (2 * sum(nbytes(a) for a in list(weights) + list(biases))
            + 2 * tb * F * x.dtype.itemsize
            + 2 * tb * store_width * x.dtype.itemsize
            + 4 * tb * max_act * 4)
    vmem_limit = int(min(64 << 20, max(16 << 20, (need * 3) // 2 + (2 << 20))))

    compiler_params = pltpu.CompilerParams(
        dimension_semantics=("parallel",), vmem_limit_bytes=vmem_limit)

    x_spec = pl.BlockSpec((tb, F), lambda i: (i, 0))              # pipelined x tiles
    out_spec = pl.BlockSpec((tb, store_width), lambda i: (i, 0))  # lane-dense output
    out_shape = jax.ShapeDtypeStruct((B, store_width), x.dtype)

    operands = [x]
    for w, b in zip(weights, biases):
        operands += [w, b]

    def resident_spec(arr, single_buf):
        nd = arr.ndim

        def idx(i):
            return (0,) * nd                                       # constant -> VMEM-resident

        if single_buf:
            # One buffer is enough for a never-changing block; double-buffering the
            # largest resident operands would just burn VMEM.
            return pl.BlockSpec(arr.shape, idx, pipeline_mode=pl.Buffered(1))
        return pl.BlockSpec(arr.shape, idx)

    def run(single_buf):
        in_specs = [x_spec] + [resident_spec(a, single_buf) for a in operands[1:]]
        return pl.pallas_call(
            kernel, grid=grid, in_specs=in_specs, out_specs=out_spec,
            out_shape=out_shape, compiler_params=compiler_params)(*operands)

    if single_buffer_weights:
        try:
            out = run(True)
        except Exception:   # pl.Buffered(1) unsupported on this jax -> default buffering
            out = run(False)
    else:
        out = run(False)

    return out[:, :out_width]       # drop the lane padding of the [sr | si] store


# ---------------- pure-JAX reference (unfused; validates fusion + packing) ----------------

def _silu(x):
    return x * jax.nn.sigmoid(x)


def _ref_mlp(x, params):
    h = x
    for li, (w, b) in enumerate(params):
        h = h @ w + b
        if li < len(params) - 1:
            h = _silu(h)
    return h


def mlp_srsi_ref(x, trunk_params, sr_params, si_params):
    t = _ref_mlp(x, trunk_params)
    return jnp.concatenate([_ref_mlp(t, sr_params), _ref_mlp(t, si_params)], axis=1)


if __name__ == "__main__":
    key = jax.random.PRNGKey(0)

    # ---- primary config (small shapes from the module's forward) ----
    B, in_features, out_features = 8, 16, 8
    trunk_layers, leaf_layers = [32, 32], [16]

    k_x, k_p, k_x2, k_p2 = jax.random.split(key, 4)
    x = jax.random.normal(k_x, (B, in_features), jnp.float32)
    trunk_p, sr_p, si_p = build_mlp_srsi_params(
        k_p, in_features, out_features, trunk_layers, leaf_layers)
    ref = mlp_srsi_ref(x, trunk_p, sr_p, si_p)

    # default path: bf16 MXU operands, f32 accumulation + f32 SiLU
    packed_bf16 = fuse_and_pack_params(trunk_p, sr_p, si_p, param_dtype=jnp.bfloat16)
    out_bf16 = jax.block_until_ready(mlp_srsi_forward(x, packed_bf16))
    assert out_bf16.shape == (B, 2 * out_features), out_bf16.shape
    assert jnp.allclose(out_bf16, ref, rtol=1e-1, atol=1e-1), "bf16 path mismatch"

    # f32 path: exactness check of the fusion / packing / kernel plumbing
    packed_f32 = fuse_and_pack_params(trunk_p, sr_p, si_p, param_dtype=jnp.float32)
    out_f32 = jax.block_until_ready(mlp_srsi_forward(x, packed_f32))
    assert jnp.allclose(out_f32, ref, rtol=2e-3, atol=2e-3), "f32 path mismatch"

    # ---- secondary config: wide leaves (exercises the split-halves path + 2-step grid) ----
    B2, in2, out2 = 40, 24, 8
    trunk2, leaf2 = [64, 48], [96, 80]
    x2 = jax.random.normal(k_x2, (B2, in2), jnp.float32)
    t2, sr2, si2 = build_mlp_srsi_params(k_p2, in2, out2, trunk2, leaf2)
    packed2 = fuse_and_pack_params(t2, sr2, si2, param_dtype=jnp.float32)
    out2_k = jax.block_until_ready(mlp_srsi_forward(x2, packed2))
    ref2 = mlp_srsi_ref(x2, t2, sr2, si2)
    assert out2_k.shape == (B2, 2 * out2), out2_k.shape
    assert jnp.allclose(out2_k, ref2, rtol=2e-3, atol=2e-3), "wide-leaf (split) path mismatch"

    print("KERNEL_OK")
</pallas_src>

<mosaic_0001>
module attributes {stable_mosaic.version = 11 : i64} {
  func.func @_mlp_srsi_kernel(%arg0: i32, %arg1: memref<8x16xf32, #tpu.memory_space<vmem>>, %arg2: memref<16x128xbf16, #tpu.memory_space<vmem>>, %arg3: memref<1x128xf32, #tpu.memory_space<vmem>>, %arg4: memref<128x128xbf16, #tpu.memory_space<vmem>>, %arg5: memref<1x128xf32, #tpu.memory_space<vmem>>, %arg6: memref<128x128xbf16, #tpu.memory_space<vmem>>, %arg7: memref<1x128xf32, #tpu.memory_space<vmem>>, %arg8: memref<128x128xbf16, #tpu.memory_space<vmem>>, %arg9: memref<1x128xf32, #tpu.memory_space<vmem>>, %arg10: memref<8x128xf32, #tpu.memory_space<vmem>>) attributes {dimension_semantics = [#tpu.dimension_semantics<parallel>], iteration_bounds = array<i64: 1>, scalar_prefetch = 0 : i64, scratch_operands = 0 : i64, tpu.core_type = #tpu.core_type<tc>, window_params = [{transform_indices = @transform_0, window_bounds = array<i64: 8, 16>}, {pipeline_mode = #tpu.pipeline_mode<synchronous>, transform_indices = @transform_1, window_bounds = array<i64: 16, 128>}, {pipeline_mode = #tpu.pipeline_mode<synchronous>, transform_indices = @transform_2, window_bounds = array<i64: 1, 128>}, {pipeline_mode = #tpu.pipeline_mode<synchronous>, transform_indices = @transform_3, window_bounds = array<i64: 128, 128>}, {pipeline_mode = #tpu.pipeline_mode<synchronous>, transform_indices = @transform_4, window_bounds = array<i64: 1, 128>}, {pipeline_mode = #tpu.pipeline_mode<synchronous>, transform_indices = @transform_5, window_bounds = array<i64: 128, 128>}, {pipeline_mode = #tpu.pipeline_mode<synchronous>, transform_indices = @transform_6, window_bounds = array<i64: 1, 128>}, {pipeline_mode = #tpu.pipeline_mode<synchronous>, transform_indices = @transform_7, window_bounds = array<i64: 128, 128>}, {pipeline_mode = #tpu.pipeline_mode<synchronous>, transform_indices = @transform_8, window_bounds = array<i64: 1, 128>}, {transform_indices = @transform_9, window_bounds = array<i64: 8, 128>}]} {
    %c0 = arith.constant 0 : index
    %c0_0 = arith.constant 0 : index
    %0 = vector.load %arg1[%c0, %c0_0] : memref<8x16xf32, #tpu.memory_space<vmem>>, vector<8x16xf32>
    %1 = arith.truncf %0 : vector<8x16xf32> to vector<8x16xbf16>
    %c0_1 = arith.constant 0 : index
    %c0_2 = arith.constant 0 : index
    %2 = vector.load %arg2[%c0_1, %c0_2] : memref<16x128xbf16, #tpu.memory_space<vmem>>, vector<16x128xbf16>
    %cst = arith.constant dense<0.000000e+00> : vector<8x128xf32>
    %3 = tpu.matmul %1, %2, %cst {dimension_numbers = #tpu.dot_dimension_numbers<[1], [0], [0], [1], [0, 0, 1, 1], [], []>} : vector<8x16xbf16>, vector<16x128xbf16>, vector<8x128xf32> -> vector<8x128xf32>
    %c0_3 = arith.constant 0 : index
    %c0_4 = arith.constant 0 : index
    %4 = vector.load %arg3[%c0_3, %c0_4] : memref<1x128xf32, #tpu.memory_space<vmem>>, vector<1x128xf32>
    %5 = vector.broadcast %4 : vector<1x128xf32> to vector<8x128xf32>
    %6 = arith.addf %3, %5 : vector<8x128xf32>
    %7 = arith.negf %6 : vector<8x128xf32>
    %8 = math.exp %7 : vector<8x128xf32>
    %cst_5 = arith.constant 1.000000e+00 : f32
    %9 = vector.broadcast %cst_5 : f32 to vector<8x128xf32>
    %10 = arith.addf %9, %8 : vector<8x128xf32>
    %11 = arith.divf %9, %10 : vector<8x128xf32>
    %12 = arith.mulf %6, %11 : vector<8x128xf32>
    %13 = arith.truncf %12 : vector<8x128xf32> to vector<8x128xbf16>
    %c0_6 = arith.constant 0 : index
    %c0_7 = arith.constant 0 : index
    %14 = vector.load %arg4[%c0_6, %c0_7] : memref<128x128xbf16, #tpu.memory_space<vmem>>, vector<128x128xbf16>
    %cst_8 = arith.constant dense<0.000000e+00> : vector<8x128xf32>
    %15 = tpu.matmul %13, %14, %cst_8 {dimension_numbers = #tpu.dot_dimension_numbers<[1], [0], [0], [1], [0, 0, 1, 1], [], []>} : vector<8x128xbf16>, vector<128x128xbf16>, vector<8x128xf32> -> vector<8x128xf32>
    %c0_9 = arith.constant 0 : index
    %c0_10 = arith.constant 0 : index
    %16 = vector.load %arg5[%c0_9, %c0_10] : memref<1x128xf32, #tpu.memory_space<vmem>>, vector<1x128xf32>
    %17 = vector.broadcast %16 : vector<1x128xf32> to vector<8x128xf32>
    %18 = arith.addf %15, %17 : vector<8x128xf32>
    %19 = arith.truncf %18 : vector<8x128xf32> to vector<8x128xbf16>
    %c0_11 = arith.constant 0 : index
    %c0_12 = arith.constant 0 : index
    %20 = vector.load %arg6[%c0_11, %c0_12] : memref<128x128xbf16, #tpu.memory_space<vmem>>, vector<128x128xbf16>
    %cst_13 = arith.constant dense<0.000000e+00> : vector<8x128xf32>
    %21 = tpu.matmul %19, %20, %cst_13 {dimension_numbers = #tpu.dot_dimension_numbers<[1], [0], [0], [1], [0, 0, 1, 1], [], []>} : vector<8x128xbf16>, vector<128x128xbf16>, vector<8x128xf32> -> vector<8x128xf32>
    %c0_14 = arith.constant 0 : index
    %c0_15 = arith.constant 0 : index
    %22 = vector.load %arg7[%c0_14, %c0_15] : memref<1x128xf32, #tpu.memory_space<vmem>>, vector<1x128xf32>
    %23 = vector.broadcast %22 : vector<1x128xf32> to vector<8x128xf32>
    %24 = arith.addf %21, %23 : vector<8x128xf32>
    %25 = arith.negf %24 : vector<8x128xf32>
    %26 = math.exp %25 : vector<8x128xf32>
    %cst_16 = arith.constant 1.000000e+00 : f32
    %27 = vector.broadcast %cst_16 : f32 to vector<8x128xf32>
    %28 = arith.addf %27, %26 : vector<8x128xf32>
    %29 = arith.divf %27, %28 : vector<8x128xf32>
    %30 = arith.mulf %24, %29 : vector<8x128xf32>
    %31 = arith.truncf %30 : vector<8x128xf32> to vector<8x128xbf16>
    %c0_17 = arith.constant 0 : index
    %c0_18 = arith.constant 0 : index
    %32 = vector.load %arg8[%c0_17, %c0_18] : memref<128x128xbf16, #tpu.memory_space<vmem>>, vector<128x128xbf16>
    %cst_19 = arith.constant dense<0.000000e+00> : vector<8x128xf32>
    %33 = tpu.matmul %31, %32, %cst_19 {dimension_numbers = #tpu.dot_dimension_numbers<[1], [0], [0], [1], [0, 0, 1, 1], [], []>} : vector<8x128xbf16>, vector<128x128xbf16>, vector<8x128xf32> -> vector<8x128xf32>
    %c0_20 = arith.constant 0 : index
    %c0_21 = arith.constant 0 : index
    %34 = vector.load %arg9[%c0_20, %c0_21] : memref<1x128xf32, #tpu.memory_space<vmem>>, vector<1x128xf32>
    %35 = vector.broadcast %34 : vector<1x128xf32> to vector<8x128xf32>
    %36 = arith.addf %33, %35 : vector<8x128xf32>
    %c0_22 = arith.constant 0 : index
    %c0_23 = arith.constant 0 : index
    %37 = vector.load %arg10[%c0_22, %c0_23] : memref<8x128xf32, #tpu.memory_space<vmem>>, vector<8x128xf32>
    tpu.vector_store %arg10[%c0_22, %c0_23], %36 {strides = array<i32>} : memref<8x128xf32, #tpu.memory_space<vmem>>, vector<8x128xf32>,
    return
  }
  func.func @transform_0(%arg0: i32) -> (i32, i32) {
    %c0_i32 = arith.constant 0 : i32
    %c0_i32_0 = arith.constant 0 : i32
    return %arg0, %c0_i32 : i32, i32
  }
  func.func @transform_1(%arg0: i32) -> (i32, i32) {
    %c0_i32 = arith.constant 0 : i32
    %c0_i32_0 = arith.constant 0 : i32
    %c0_i32_1 = arith.constant 0 : i32
    return %c0_i32, %c0_i32_0 : i32, i32
  }
  func.func @transform_2(%arg0: i32) -> (i32, i32) {
    %c0_i32 = arith.constant 0 : i32
    %c0_i32_0 = arith.constant 0 : i32
    %c0_i32_1 = arith.constant 0 : i32
    return %c0_i32, %c0_i32_0 : i32, i32
  }
  func.func @transform_3(%arg0: i32) -> (i32, i32) {
    %c0_i32 = arith.constant 0 : i32
    %c0_i32_0 = arith.constant 0 : i32
    %c0_i32_1 = arith.constant 0 : i32
    return %c0_i32, %c0_i32_0 : i32, i32
  }
  func.func @transform_4(%arg0: i32) -> (i32, i32) {
    %c0_i32 = arith.constant 0 : i32
    %c0_i32_0 = arith.constant 0 : i32
    %c0_i32_1 = arith.constant 0 : i32
    return %c0_i32, %c0_i32_0 : i32, i32
  }
  func.func @transform_5(%arg0: i32) -> (i32, i32) {
    %c0_i32 = arith.constant 0 : i32
    %c0_i32_0 = arith.constant 0 : i32
    %c0_i32_1 = arith.constant 0 : i32
    return %c0_i32, %c0_i32_0 : i32, i32
  }
  func.func @transform_6(%arg0: i32) -> (i32, i32) {
    %c0_i32 = arith.constant 0 : i32
    %c0_i32_0 = arith.constant 0 : i32
    %c0_i32_1 = arith.constant 0 : i32
    return %c0_i32, %c0_i32_0 : i32, i32
  }
  func.func @transform_7(%arg0: i32) -> (i32, i32) {
    %c0_i32 = arith.constant 0 : i32
    %c0_i32_0 = arith.constant 0 : i32
    %c0_i32_1 = arith.constant 0 : i32
    return %c0_i32, %c0_i32_0 : i32, i32
  }
  func.func @transform_8(%arg0: i32) -> (i32, i32) {
    %c0_i32 = arith.constant 0 : i32
    %c0_i32_0 = arith.constant 0 : i32
    %c0_i32_1 = arith.constant 0 : i32
    return %c0_i32, %c0_i32_0 : i32, i32
  }
  func.func @transform_9(%arg0: i32) -> (i32, i32) {
    %c0_i32 = arith.constant 0 : i32
    %c0_i32_0 = arith.constant 0 : i32
    return %arg0, %c0_i32 : i32, i32
  }
}

module attributes {stable_mosaic.version = 11 : i64} {
  func.func @_mlp_srsi_kernel(%arg0: i32, %arg1: memref<8x16xf32, #tpu.memory_space<vmem>>, %arg2: memref<16x128xbf16, #tpu.memory_space<vmem>>, %arg3: memref<1x128xf32, #tpu.memory_space<vmem>>, %arg4: memref<128x128xbf16, #tpu.memory_space<vmem>>, %arg5: memref<1x128xf32, #tpu.memory_space<vmem>>, %arg6: memref<128x128xbf16, #tpu.memory_space<vmem>>, %arg7: memref<1x128xf32, #tpu.memory_space<vmem>>, %arg8: memref<128x128xbf16, #tpu.memory_space<vmem>>, %arg9: memref<1x128xf32, #tpu.memory_space<vmem>>, %arg10: memref<8x128xf32, #tpu.memory_space<vmem>>) attributes {dimension_semantics = [#tpu.dimension_semantics<parallel>], iteration_bounds = array<i64: 1>, scalar_prefetch = 0 : i64, scratch_operands = 0 : i64, tpu.core_type = #tpu.core_type<tc>, window_params = [{transform_indices = @transform_0, window_bounds = array<i64: 8, 16>}, {pipeline_mode = #tpu.pipeline_mode<synchronous>, transform_indices = @transform_1, window_bounds = array<i64: 16, 128>}, {pipeline_mode = #tpu.pipeline_mode<synchronous>, transform_indices = @transform_2, window_bounds = array<i64: 1, 128>}, {pipeline_mode = #tpu.pipeline_mode<synchronous>, transform_indices = @transform_3, window_bounds = array<i64: 128, 128>}, {pipeline_mode = #tpu.pipeline_mode<synchronous>, transform_indices = @transform_4, window_bounds = array<i64: 1, 128>}, {pipeline_mode = #tpu.pipeline_mode<synchronous>, transform_indices = @transform_5, window_bounds = array<i64: 128, 128>}, {pipeline_mode = #tpu.pipeline_mode<synchronous>, transform_indices = @transform_6, window_bounds = array<i64: 1, 128>}, {pipeline_mode = #tpu.pipeline_mode<synchronous>, transform_indices = @transform_7, window_bounds = array<i64: 128, 128>}, {pipeline_mode = #tpu.pipeline_mode<synchronous>, transform_indices = @transform_8, window_bounds = array<i64: 1, 128>}, {transform_indices = @transform_9, window_bounds = array<i64: 8, 128>}]} {
    %c0 = arith.constant 0 : index
    %c0_0 = arith.constant 0 : index
    %0 = vector.load %arg1[%c0, %c0_0] : memref<8x16xf32, #tpu.memory_space<vmem>>, vector<8x16xf32>
    %1 = arith.truncf %0 : vector<8x16xf32> to vector<8x16xbf16>
    %c0_1 = arith.constant 0 : index
    %c0_2 = arith.constant 0 : index
    %2 = vector.load %arg2[%c0_1, %c0_2] : memref<16x128xbf16, #tpu.memory_space<vmem>>, vector<16x128xbf16>
    %cst = arith.constant dense<0.000000e+00> : vector<8x128xf32>
    %3 = tpu.matmul %1, %2, %cst {dimension_numbers = #tpu.dot_dimension_numbers<[1], [0], [0], [1], [0, 0, 1, 1], [], []>} : vector<8x16xbf16>, vector<16x128xbf16>, vector<8x128xf32> -> vector<8x128xf32>
    %c0_3 = arith.constant 0 : index
    %c0_4 = arith.constant 0 : index
    %4 = vector.load %arg3[%c0_3, %c0_4] : memref<1x128xf32, #tpu.memory_space<vmem>>, vector<1x128xf32>
    %5 = vector.broadcast %4 : vector<1x128xf32> to vector<8x128xf32>
    %6 = arith.addf %3, %5 : vector<8x128xf32>
    %7 = arith.negf %6 : vector<8x128xf32>
    %8 = math.exp %7 : vector<8x128xf32>
    %cst_5 = arith.constant 1.000000e+00 : f32
    %9 = vector.broadcast %cst_5 : f32 to vector<8x128xf32>
    %10 = arith.addf %9, %8 : vector<8x128xf32>
    %11 = arith.divf %9, %10 : vector<8x128xf32>
    %12 = arith.mulf %6, %11 : vector<8x128xf32>
    %13 = arith.truncf %12 : vector<8x128xf32> to vector<8x128xbf16>
    %c0_6 = arith.constant 0 : index
    %c0_7 = arith.constant 0 : index
    %14 = vector.load %arg4[%c0_6, %c0_7] : memref<128x128xbf16, #tpu.memory_space<vmem>>, vector<128x128xbf16>
    %cst_8 = arith.constant dense<0.000000e+00> : vector<8x128xf32>
    %15 = tpu.matmul %13, %14, %cst_8 {dimension_numbers = #tpu.dot_dimension_numbers<[1], [0], [0], [1], [0, 0, 1, 1], [], []>} : vector<8x128xbf16>, vector<128x128xbf16>, vector<8x128xf32> -> vector<8x128xf32>
    %c0_9 = arith.constant 0 : index
    %c0_10 = arith.constant 0 : index
    %16 = vector.load %arg5[%c0_9, %c0_10] : memref<1x128xf32, #tpu.memory_space<vmem>>, vector<1x128xf32>
    %17 = vector.broadcast %16 : vector<1x128xf32> to vector<8x128xf32>
    %18 = arith.addf %15, %17 : vector<8x128xf32>
    %19 = arith.truncf %18 : vector<8x128xf32> to vector<8x128xbf16>
    %c0_11 = arith.constant 0 : index
    %c0_12 = arith.constant 0 : index
    %20 = vector.load %arg6[%c0_11, %c0_12] : memref<128x128xbf16, #tpu.memory_space<vmem>>, vector<128x128xbf16>
    %cst_13 = arith.constant dense<0.000000e+00> : vector<8x128xf32>
    %21 = tpu.matmul %19, %20, %cst_13 {dimension_numbers = #tpu.dot_dimension_numbers<[1], [0], [0], [1], [0, 0, 1, 1], [], []>} : vector<8x128xbf16>, vector<128x128xbf16>, vector<8x128xf32> -> vector<8x128xf32>
    %c0_14 = arith.constant 0 : index
    %c0_15 = arith.constant 0 : index
    %22 = vector.load %arg7[%c0_14, %c0_15] : memref<1x128xf32, #tpu.memory_space<vmem>>, vector<1x128xf32>
    %23 = vector.broadcast %22 : vector<1x128xf32> to vector<8x128xf32>
    %24 = arith.addf %21, %23 : vector<8x128xf32>
    %25 = arith.negf %24 : vector<8x128xf32>
    %26 = math.exp %25 : vector<8x128xf32>
    %cst_16 = arith.constant 1.000000e+00 : f32
    %27 = vector.broadcast %cst_16 : f32 to vector<8x128xf32>
    %28 = arith.addf %27, %26 : vector<8x128xf32>
    %29 = arith.divf %27, %28 : vector<8x128xf32>
    %30 = arith.mulf %24, %29 : vector<8x128xf32>
    %31 = arith.truncf %30 : vector<8x128xf32> to vector<8x128xbf16>
    %c0_17 = arith.constant 0 : index
    %c0_18 = arith.constant 0 : index
    %32 = vector.load %arg8[%c0_17, %c0_18] : memref<128x128xbf16, #tpu.memory_space<vmem>>, vector<128x128xbf16>
    %cst_19 = arith.constant dense<0.000000e+00> : vector<8x128xf32>
    %33 = tpu.matmul %31, %32, %cst_19 {dimension_numbers = #tpu.dot_dimension_numbers<[1], [0], [0], [1], [0, 0, 1, 1], [], []>} : vector<8x128xbf16>, vector<128x128xbf16>, vector<8x128xf32> -> vector<8x128xf32>
    %c0_20 = arith.constant 0 : index
    %c0_21 = arith.constant 0 : index
    %34 = vector.load %arg9[%c0_20, %c0_21] : memref<1x128xf32, #tpu.memory_space<vmem>>, vector<1x128xf32>
    %35 = vector.broadcast %34 : vector<1x128xf32> to vector<8x128xf32>
    %36 = arith.addf %33, %35 : vector<8x128xf32>
    %c0_22 = arith.constant 0 : index
    %c0_23 = arith.constant 0 : index
    %37 = vector.load %arg10[%c0_22, %c0_23] : memref<8x128xf32, #tpu.memory_space<vmem>>, vector<8x128xf32>
    tpu.vector_store %arg10[%c0_22, %c0_23], %36 {strides = array<i32>} : memref<8x128xf32, #tpu.memory_space<vmem>>, vector<8x128xf32>,
    return
  }
  func.func @transform_0(%arg0: i32) -> (i32, i32) {
    %c0_i32 = arith.constant 0 : i32
    %c0_i32_0 = arith.constant 0 : i32
    return %arg0, %c0_i32 : i32, i32
  }
  func.func @transform_1(%arg0: i32) -> (i32, i32) {
    %c0_i32 = arith.constant 0 : i32
    %c0_i32_0 = arith.constant 0 : i32
    %c0_i32_1 = arith.constant 0 : i32
    return %c0_i32, %c0_i32_0 : i32, i32
  }
  func.func @transform_2(%arg0: i32) -> (i32, i32) {
    %c0_i32 = arith.constant 0 : i32
    %c0_i32_0 = arith.constant 0 : i32
    %c0_i32_1 = arith.constant 0 : i32
    return %c0_i32, %c0_i32_0 : i32, i32
  }
  func.func @transform_3(%arg0: i32) -> (i32, i32) {
    %c0_i32 = arith.constant 0 : i32
    %c0_i32_0 = arith.constant 0 : i32
    %c0_i32_1 = arith.constant 0 : i32
    return %c0_i32, %c0_i32_0 : i32, i32
  }
  func.func @transform_4(%arg0: i32) -> (i32, i32) {
    %c0_i32 = arith.constant 0 : i32
    %c0_i32_0 = arith.constant 0 : i32
    %c0_i32_1 = arith.constant 0 : i32
    return %c0_i32, %c0_i32_0 : i32, i32
  }
  func.func @transform_5(%arg0: i32) -> (i32, i32) {
    %c0_i32 = arith.constant 0 : i32
    %c0_i32_0 = arith.constant 0 : i32
    %c0_i32_1 = arith.constant 0 : i32
    return %c0_i32, %c0_i32_0 : i32, i32
  }
  func.func @transform_6(%arg0: i32) -> (i32, i32) {
    %c0_i32 = arith.constant 0 : i32
    %c0_i32_0 = arith.constant 0 : i32
    %c0_i32_1 = arith.constant 0 : i32
    return %c0_i32, %c0_i32_0 : i32, i32
  }
  func.func @transform_7(%arg0: i32) -> (i32, i32) {
    %c0_i32 = arith.constant 0 : i32
    %c0_i32_0 = arith.constant 0 : i32
    %c0_i32_1 = arith.constant 0 : i32
    return %c0_i32, %c0_i32_0 : i32, i32
  }
  func.func @transform_8(%arg0: i32) -> (i32, i32) {
    %c0_i32 = arith.constant 0 : i32
    %c0_i32_0 = arith.constant 0 : i32
    %c0_i32_1 = arith.constant 0 : i32
    return %c0_i32, %c0_i32_0 : i32, i32
  }
  func.func @transform_9(%arg0: i32) -> (i32, i32) {
    %c0_i32 = arith.constant 0 : i32
    %c0_i32_0 = arith.constant 0 : i32
    return %arg0, %c0_i32 : i32, i32
  }
}

</mosaic_0001>

<llo_original>
// kernel: tpu_custom_call.1
$region0: #{tpu_custom_call.1}
  #allocation0 [shape = 'u32[]', space=smem, size = 0x4, offset = 0x4, fixed_abs, tag = 'smem constant byte address 0x4 - core index']
  #allocation1 [shape = 'u32[72,128]{1,0:T(1,128)}', space=vmem, size = 0x9000, scoped, tag = 'internal scratch']
  %s0 = inlined_call_operand.hbm [shape: f32[8,16], index: 0, kind: input, shape index: {}]
  %s1 = inlined_call_operand.hbm [shape: bf16[16,128], index: 1, kind: input, shape index: {}]
  %s2 = inlined_call_operand.vmem [shape: f32[1,128], index: 2, kind: input, shape index: {}]
  %s3 = inlined_call_operand.hbm [shape: bf16[128,128], index: 3, kind: input, shape index: {}]
  %s4 = inlined_call_operand.vmem [shape: f32[1,128], index: 4, kind: input, shape index: {}]
  %s5 = inlined_call_operand.hbm [shape: bf16[128,128], index: 5, kind: input, shape index: {}]
  %s6 = inlined_call_operand.vmem [shape: f32[1,128], index: 6, kind: input, shape index: {}]
  %s7 = inlined_call_operand.hbm [shape: bf16[128,128], index: 7, kind: input, shape index: {}]
  %s8 = inlined_call_operand.vmem [shape: f32[1,128], index: 8, kind: input, shape index: {}]
  %s9 = inlined_call_operand.hbm [shape: f32[8,128], index: 9, kind: output, shape index: {}]
  %s10 = sld [smem:[#allocation0]]
  $region66: #{tpu_custom_call.1} parent=0
    _
  %s12 = ssub.s32 1, %s10
  %s13 = scalar_select 0, %s12, %s10
  $region1: #{tpu_custom_call.1} parent=0
    #allocation2 [shape = 'u8[4096]{0}', space=vmem, size = 0x1000, scoped, tag = 'input window, operand 0, single buffered']
    #allocation3 [shape = 's32[1]{0}', space=sflag, size = 0x4, scoped, tag = 'scoped memory for tpu_custom_call.1']
    #allocation4 [shape = 's32[1]{0}', space=sflag, size = 0x4, scoped, tag = 'scoped memory for tpu_custom_call.1']
    #allocation5 [shape = 'u8[4096]{0}', space=vmem, size = 0x1000, scoped, tag = 'input window, operand 1, single buffered']
    #allocation6 [shape = 's32[1]{0}', space=sflag, size = 0x4, scoped, tag = 'scoped memory for tpu_custom_call.1']
    #allocation7 [shape = 'u8[32768]{0}', space=vmem, size = 0x8000, scoped, tag = 'input window, operand 3, single buffered']
    #allocation8 [shape = 'u8[32768]{0}', space=vmem, size = 0x8000, scoped, tag = 'input window, operand 5, single buffered']
    #allocation9 [shape = 's32[1]{0}', space=sflag, size = 0x4, scoped, tag = 'scoped memory for tpu_custom_call.1']
    #allocation10 [shape = 'u8[32768]{0}', space=vmem, size = 0x8000, scoped, tag = 'input window, operand 7, single buffered']
    #allocation11 [shape = 'u8[4096]{0}', space=vmem, size = 0x1000, scoped, tag = 'output window, operand 0, single buffered']
    %14 = vsyncpa [#allocation3], 0
    %15 = vsyncpa [#allocation6], 0
    %16 = vsyncpa [#allocation9], 0
    %17 = vsyncpa [#allocation4], 0
    // Predicated region
    $region2: #{tpu_custom_call.1} parent=1 // pred_check
      _
    $region3: #{tpu_custom_call.1} parent=1 // pred_check_branch
      %19 = sbr.rel (0) target = $region5
    $region4: #{tpu_custom_call.1} parent=1 // pred_region
      %21 = vsyncadd [#allocation3], 0
      %s23 = sshll.u32 %s0, 4
      %s24 = int_to_ptr.hbm [resolvable:$true] %s23
      %s25 = sshll.u32 [#allocation2], 4
      %s26 = int_to_ptr.vmem [resolvable:$true] %s25
      %28 = dma.hbm_to_vmem [thread:$0]  %s24, 128, %s26, [#allocation3]
    $region5: #{tpu_custom_call.1} parent=1 // pred_fallthru
      _
    // Predicated region
    $region6: #{tpu_custom_call.1} parent=1 // pred_check
      _
    $region7: #{tpu_custom_call.1} parent=1 // pred_check_branch
      %30 = sbr.rel (0) target = $region9
    $region8: #{tpu_custom_call.1} parent=1 // pred_region
      %32 = vsyncadd [#allocation6], 0
      %s33 = sshll.u32 %s1, 4
      %s34 = int_to_ptr.hbm [resolvable:$true] %s33
      %s35 = sshll.u32 [#allocation5], 4
      %s36 = int_to_ptr.vmem [resolvable:$true] %s35
      %41 = dma.hbm_to_vmem [thread:$0]  %s34, 128, %s36, [#allocation6], 64, 64, 4
    $region9: #{tpu_custom_call.1} parent=1 // pred_fallthru
      _
    // Predicated region
    $region10: #{tpu_custom_call.1} parent=1 // pred_check
      _
    $region11: #{tpu_custom_call.1} parent=1 // pred_check_branch
      %43 = sbr.rel (0) target = $region13
    $region12: #{tpu_custom_call.1} parent=1 // pred_region
      _
    $region13: #{tpu_custom_call.1} parent=1 // pred_fallthru
      _
    // Predicated region
    $region14: #{tpu_custom_call.1} parent=1 // pred_check
      _
    $region15: #{tpu_custom_call.1} parent=1 // pred_check_branch
      %45 = sbr.rel (0) target = $region17
    $region16: #{tpu_custom_call.1} parent=1 // pred_region
      %47 = vsyncadd [#allocation6], 0
      %s48 = sshll.u32 %s3, 4
      %s49 = int_to_ptr.hbm [resolvable:$true] %s48
      %s50 = sshll.u32 [#allocation7], 4
      %s51 = int_to_ptr.vmem [resolvable:$true] %s50
      %56 = dma.hbm_to_vmem [thread:$0]  %s49, 1024, %s51, [#allocation6], 64, 64, 4
    $region17: #{tpu_custom_call.1} parent=1 // pred_fallthru
      _
    // Predicated region
    $region18: #{tpu_custom_call.1} parent=1 // pred_check
      _
    $region19: #{tpu_custom_call.1} parent=1 // pred_check_branch
      %58 = sbr.rel (0) target = $region21
    $region20: #{tpu_custom_call.1} parent=1 // pred_region
      _
    $region21: #{tpu_custom_call.1} parent=1 // pred_fallthru
      _
    // Predicated region
    $region22: #{tpu_custom_call.1} parent=1 // pred_check
      _
    $region23: #{tpu_custom_call.1} parent=1 // pred_check_branch
      %60 = sbr.rel (0) target = $region25
    $region24: #{tpu_custom_call.1} parent=1 // pred_region
      %62 = vsyncadd [#allocation9], 0
      %s63 = sshll.u32 %s5, 4
      %s64 = int_to_ptr.hbm [resolvable:$true] %s63
      %s65 = sshll.u32 [#allocation8], 4
      %s66 = int_to_ptr.vmem [resolvable:$true] %s65
      %71 = dma.hbm_to_vmem [thread:$0]  %s64, 1024, %s66, [#allocation9], 64, 64, 4
    $region25: #{tpu_custom_call.1} parent=1 // pred_fallthru
      _
    // Predicated region
    $region26: #{tpu_custom_call.1} parent=1 // pred_check
      _
    $region27: #{tpu_custom_call.1} parent=1 // pred_check_branch
      %73 = sbr.rel (0) target = $region29
    $region28: #{tpu_custom_call.1} parent=1 // pred_region
      _
    $region29: #{tpu_custom_call.1} parent=1 // pred_fallthru
      _
    // Predicated region
    $region30: #{tpu_custom_call.1} parent=1 // pred_check
      _
    $region31: #{tpu_custom_call.1} parent=1 // pred_check_branch
      %75 = sbr.rel (0) target = $region33
    $region32: #{tpu_custom_call.1} parent=1 // pred_region
      %77 = vsyncadd [#allocation9], 0
      %s78 = sshll.u32 %s7, 4
      %s79 = int_to_ptr.hbm [resolvable:$true] %s78
      %s80 = sshll.u32 [#allocation10], 4
      %s81 = int_to_ptr.vmem [resolvable:$true] %s80
      %86 = dma.hbm_to_vmem [thread:$0]  %s79, 1024, %s81, [#allocation9], 64, 64, 4
    $region33: #{tpu_custom_call.1} parent=1 // pred_fallthru
      _
    // Predicated region
    $region34: #{tpu_custom_call.1} parent=1 // pred_check
      _
    $region35: #{tpu_custom_call.1} parent=1 // pred_check_branch
      %88 = sbr.rel (0) target = $region37
    $region36: #{tpu_custom_call.1} parent=1 // pred_region
      _
    $region37: #{tpu_custom_call.1} parent=1 // pred_fallthru
      _
    // Predicated region
    $region38: #{tpu_custom_call.1} parent=1 // pred_check
      _
    $region39: #{tpu_custom_call.1} parent=1 // pred_check_branch
      %90 = sbr.rel (0) target = $region41
    $region40: #{tpu_custom_call.1} parent=1 // pred_region
      %92 = dma.done [#allocation3], 128
    $region41: #{tpu_custom_call.1} parent=1 // pred_fallthru
      _
    // Predicated region
    $region42: #{tpu_custom_call.1} parent=1 // pred_check
      _
    $region43: #{tpu_custom_call.1} parent=1 // pred_check_branch
      %94 = sbr.rel (0) target = $region45
    $region44: #{tpu_custom_call.1} parent=1 // pred_region
      %96 = dma.done [#allocation6], 128
    $region45: #{tpu_custom_call.1} parent=1 // pred_fallthru
      _
    // Predicated region
    $region46: #{tpu_custom_call.1} parent=1 // pred_check
      _
    $region47: #{tpu_custom_call.1} parent=1 // pred_check_branch
      %98 = sbr.rel (0) target = $region49
    $region48: #{tpu_custom_call.1} parent=1 // pred_region
      %100 = dma.done [#allocation6], 1024
    $region49: #{tpu_custom_call.1} parent=1 // pred_fallthru
      _
    // Predicated region
    $region50: #{tpu_custom_call.1} parent=1 // pred_check
      _
    $region51: #{tpu_custom_call.1} parent=1 // pred_check_branch
      %102 = sbr.rel (0) target = $region53
    $region52: #{tpu_custom_call.1} parent=1 // pred_region
      %104 = dma.done [#allocation9], 1024
    $region53: #{tpu_custom_call.1} parent=1 // pred_fallthru
      _
    // Predicated region
    $region54: #{tpu_custom_call.1} parent=1 // pred_check
      _
    $region55: #{tpu_custom_call.1} parent=1 // pred_check_branch
      %106 = sbr.rel (0) target = $region57
    $region56: #{tpu_custom_call.1} parent=1 // pred_region
      %108 = dma.done [#allocation9], 1024
    $region57: #{tpu_custom_call.1} parent=1 // pred_fallthru
      _
    %v110 = vld [vmem:[#allocation2] sm:$0xff]
    %v111 = vpack.c.bf16 %v110, %v110
    %v112 = vld [vmem:[#allocation5] sm:$0xf]
    %v113 = vld [vmem:[#allocation5 + $0x4] sm:$0xf]
    %v114 = vld [vmem:[%s2] sm:$0x1]
    %v116 = vperm.slane %v114, 0
    %v120 = vunpack.c.l.b16 %v112
    %v121 = vunpack.c.l.b16 %v113
    %v122 = vpack.c.b16 %v121, %v120
    %vm124 = vcmask 130048
    %v126 = vsel %vm124, %v111, 0
    %128 = vmatpush.bf16.msra.mxu0 0
    %129 = vmatpush.bf16.msra.mxu0 0
    %130 = vmatpush.bf16.msra.mxu0 0
    %131 = vmatpush.bf16.msra.mxu0 0
    %132 = vmatpush.bf16.msra.mxu0 0
    %133 = vmatpush.bf16.msra.mxu0 0
    %134 = vmatpush.bf16.msra.mxu0 0
    %135 = vmatpush.bf16.msra.mxu0 %v122
    %136 = vmatmul.bf16.gmra.mxu0 %v126
    %v137 = vpop.f32.mrf.mxu0
    %v138 = vadd.f32 %v116, %v137
    %v139 = vpop.f32.mrf.mxu0
    %140 = vdwg.mxu0
    %v141 = vxor.u32 %v138, 2147483648
    %v142 = vmul.f32 %v141, 1.442695
    %v143 = vpow.pop %v142
    %v144 = vadd.f32 %v143, 1.0
    %v145 = vrcp.pop %v144
    %v146 = vmul.f32 %v144, %v145
    %v147 = vsub.f32 1.0, %v146
    %v148 = vmul.f32 %v145, %v147
    %v149 = vadd.f32 %v145, %v148
    %vm150 = vweird.f32 %v144
    %vm151 = vweird.f32 %v145
    %vm152 = vmor %vm150, %vm151
    %v153 = vsel %vm152, %v145, %v149
    %v154 = vand.u32 2147483647, %v144
    %vm155 = vcmp.eq.f32.partialorder %v154, 8.507059e+37
    %v156 = vand.u32 %v144, 2147483648
    %v157 = vor.u32 1.1754944e-38, %v156
    %v158 = vsel %vm155, %v157, %v153
    %v159 = vmul.f32 1.0, %v158
    %v160 = vmul.f32 %v138, %v159
    %v161 = vpack.c.bf16 %v160, %v160
    %v162 = vld [vmem:[#allocation7] sm:$0xf]
    %v163 = vld [vmem:[#allocation7 + $0x4] sm:$0xf]
    %v164 = vld [vmem:[#allocation7 + $0x8] sm:$0xf]
    %v165 = vld [vmem:[#allocation7 + $0xc] sm:$0xf]
    %v166 = vld [vmem:[#allocation7 + $0x10] sm:$0xf]
    %v167 = vld [vmem:[#allocation7 + $0x14] sm:$0xf]
    %v168 = vld [vmem:[#allocation7 + $0x18] sm:$0xf]
    %v169 = vld [vmem:[#allocation7 + $0x1c] sm:$0xf]
    %v170 = vld [vmem:[#allocation7 + $0x20] sm:$0xf]
    %v171 = vld [vmem:[#allocation7 + $0x24] sm:$0xf]
    %v172 = vld [vmem:[#allocation7 + $0x28] sm:$0xf]
    %v173 = vld [vmem:[#allocation7 + $0x2c] sm:$0xf]
    %v174 = vld [vmem:[#allocation7 + $0x30] sm:$0xf]
    %v175 = vld [vmem:[#allocation7 + $0x34] sm:$0xf]
    %v176 = vld [vmem:[#allocation7 + $0x38] sm:$0xf]
    %v177 = vld [vmem:[#allocation7 + $0x3c] sm:$0xf]
    %v178 = vld [vmem:[%s4] sm:$0x1]
    %v180 = vperm.slane %v178, 0
    %v198 = vunpack.c.l.b16 %v162
    %v199 = vunpack.c.l.b16 %v163
    %v200 = vunpack.c.l.b16 %v164
    %v201 = vunpack.c.l.b16 %v165
    %v202 = vunpack.c.l.b16 %v166
    %v203 = vunpack.c.l.b16 %v167
    %v204 = vunpack.c.l.b16 %v168
    %v205 = vunpack.c.l.b16 %v169
    %v206 = vunpack.c.l.b16 %v170
    %v207 = vunpack.c.l.b16 %v171
    %v208 = vunpack.c.l.b16 %v172
    %v209 = vunpack.c.l.b16 %v173
    %v210 = vunpack.c.l.b16 %v174
    %v211 = vunpack.c.l.b16 %v175
    %v212 = vunpack.c.l.b16 %v176
    %v213 = vunpack.c.l.b16 %v177
    %v214 = vpack.c.b16 %v199, %v198
    %v215 = vpack.c.b16 %v201, %v200
    %v216 = vpack.c.b16 %v203, %v202
    %v217 = vpack.c.b16 %v205, %v204
    %v218 = vpack.c.b16 %v207, %v206
    %v219 = vpack.c.b16 %v209, %v208
    %v220 = vpack.c.b16 %v211, %v210
    %v221 = vpack.c.b16 %v213, %v212
    %230 = vmatpush.bf16.msra.mxu0 %v221
    %231 = vmatpush.bf16.msra.mxu0 %v220
    %232 = vmatpush.bf16.msra.mxu0 %v219
    %233 = vmatpush.bf16.msra.mxu0 %v218
    %234 = vmatpush.bf16.msra.mxu0 %v217
    %235 = vmatpush.bf16.msra.mxu0 %v216
    %236 = vmatpush.bf16.msra.mxu0 %v215
    %237 = vmatpush.bf16.msra.mxu0 %v214
    %238 = vmatmul.bf16.gmra.mxu0 %v161
    %v239 = vpop.f32.mrf.mxu0
    %v240 = vadd.f32 %v180, %v239
    %v241 = vpop.f32.mrf.mxu0
    %242 = vdwg.mxu0
    %v243 = vpack.c.bf16 %v240, %v240
    %v244 = vld [vmem:[#allocation8] sm:$0xf]
    %v245 = vld [vmem:[#allocation8 + $0x4] sm:$0xf]
    %v246 = vld [vmem:[#allocation8 + $0x8] sm:$0xf]
    %v247 = vld [vmem:[#allocation8 + $0xc] sm:$0xf]
    %v248 = vld [vmem:[#allocation8 + $0x10] sm:$0xf]
    %v249 = vld [vmem:[#allocation8 + $0x14] sm:$0xf]
    %v250 = vld [vmem:[#allocation8 + $0x18] sm:$0xf]
    %v251 = vld [vmem:[#allocation8 + $0x1c] sm:$0xf]
    %v252 = vld [vmem:[#allocation8 + $0x20] sm:$0xf]
    %v253 = vld [vmem:[#allocation8 + $0x24] sm:$0xf]
    %v254 = vld [vmem:[#allocation8 + $0x28] sm:$0xf]
    %v255 = vld [vmem:[#allocation8 + $0x2c] sm:$0xf]
    %v256 = vld [vmem:[#allocation8 + $0x30] sm:$0xf]
    %v257 = vld [vmem:[#allocation8 + $0x34] sm:$0xf]
    %v258 = vld [vmem:[#allocation8 + $0x38] sm:$0xf]
    %v259 = vld [vmem:[#allocation8 + $0x3c] sm:$0xf]
    %v260 = vld [vmem:[%s6] sm:$0x1]
    %v262 = vperm.slane %v260, 0
    %v280 = vunpack.c.l.b16 %v244
    %v281 = vunpack.c.l.b16 %v245
    %v282 = vunpack.c.l.b16 %v246
    %v283 = vunpack.c.l.b16 %v247
    %v284 = vunpack.c.l.b16 %v248
    %v285 = vunpack.c.l.b16 %v249
    %v286 = vunpack.c.l.b16 %v250
    %v287 = vunpack.c.l.b16 %v251
    %v288 = vunpack.c.l.b16 %v252
    %v289 = vunpack.c.l.b16 %v253
    %v290 = vunpack.c.l.b16 %v254
    %v291 = vunpack.c.l.b16 %v255
    %v292 = vunpack.c.l.b16 %v256
    %v293 = vunpack.c.l.b16 %v257
    %v294 = vunpack.c.l.b16 %v258
    %v295 = vunpack.c.l.b16 %v259
    %v296 = vpack.c.b16 %v281, %v280
    %v297 = vpack.c.b16 %v283, %v282
    %v298 = vpack.c.b16 %v285, %v284
    %v299 = vpack.c.b16 %v287, %v286
    %v300 = vpack.c.b16 %v289, %v288
    %v301 = vpack.c.b16 %v291, %v290
    %v302 = vpack.c.b16 %v293, %v292
    %v303 = vpack.c.b16 %v295, %v294
    %312 = vmatpush.bf16.msra.mxu0 %v303
    %313 = vmatpush.bf16.msra.mxu0 %v302
    %314 = vmatpush.bf16.msra.mxu0 %v301
    %315 = vmatpush.bf16.msra.mxu0 %v300
    %316 = vmatpush.bf16.msra.mxu0 %v299
    %317 = vmatpush.bf16.msra.mxu0 %v298
    %318 = vmatpush.bf16.msra.mxu0 %v297
    %319 = vmatpush.bf16.msra.mxu0 %v296
    %320 = vmatmul.bf16.gmra.mxu0 %v243
    %v321 = vpop.f32.mrf.mxu0
    %v322 = vadd.f32 %v262, %v321
    %v323 = vpop.f32.mrf.mxu0
    %324 = vdwg.mxu0
    %v325 = vxor.u32 %v322, 2147483648
    %v326 = vmul.f32 %v325, 1.442695
    %v327 = vpow.pop %v326
    %v328 = vadd.f32 %v327, 1.0
    %v329 = vrcp.pop %v328
    %v330 = vmul.f32 %v328, %v329
    %v331 = vsub.f32 1.0, %v330
    %v332 = vmul.f32 %v329, %v331
    %v333 = vadd.f32 %v329, %v332
    %vm334 = vweird.f32 %v328
    %vm335 = vweird.f32 %v329
    %vm336 = vmor %vm334, %vm335
    %v337 = vsel %vm336, %v329, %v333
    %v338 = vand.u32 2147483647, %v328
    %vm339 = vcmp.eq.f32.partialorder %v338, 8.507059e+37
    %v340 = vand.u32 %v328, 2147483648
    %v341 = vor.u32 1.1754944e-38, %v340
    %v342 = vsel %vm339, %v341, %v337
    %v343 = vmul.f32 1.0, %v342
    %v344 = vmul.f32 %v322, %v343
    %v345 = vpack.c.bf16 %v344, %v344
    %v346 = vld [vmem:[#allocation10] sm:$0xf]
    %v347 = vld [vmem:[#allocation10 + $0x4] sm:$0xf]
    %v348 = vld [vmem:[#allocation10 + $0x8] sm:$0xf]
    %v349 = vld [vmem:[#allocation10 + $0xc] sm:$0xf]
    %v350 = vld [vmem:[#allocation10 + $0x10] sm:$0xf]
    %v351 = vld [vmem:[#allocation10 + $0x14] sm:$0xf]
    %v352 = vld [vmem:[#allocation10 + $0x18] sm:$0xf]
    %v353 = vld [vmem:[#allocation10 + $0x1c] sm:$0xf]
    %v354 = vld [vmem:[#allocation10 + $0x20] sm:$0xf]
    %v355 = vld [vmem:[#allocation10 + $0x24] sm:$0xf]
    %v356 = vld [vmem:[#allocation10 + $0x28] sm:$0xf]
    %v357 = vld [vmem:[#allocation10 + $0x2c] sm:$0xf]
    %v358 = vld [vmem:[#allocation10 + $0x30] sm:$0xf]
    %v359 = vld [vmem:[#allocation10 + $0x34] sm:$0xf]
    %v360 = vld [vmem:[#allocation10 + $0x38] sm:$0xf]
    %v361 = vld [vmem:[#allocation10 + $0x3c] sm:$0xf]
    %v362 = vld [vmem:[%s8] sm:$0x1]
    %v364 = vperm.slane %v362, 0
    %v382 = vunpack.c.l.b16 %v346
    %v383 = vunpack.c.l.b16 %v347
    %v384 = vunpack.c.l.b16 %v348
    %v385 = vunpack.c.l.b16 %v349
    %v386 = vunpack.c.l.b16 %v350
    %v387 = vunpack.c.l.b16 %v351
    %v388 = vunpack.c.l.b16 %v352
    %v389 = vunpack.c.l.b16 %v353
    %v390 = vunpack.c.l.b16 %v354
    %v391 = vunpack.c.l.b16 %v355
    %v392 = vunpack.c.l.b16 %v356
    %v393 = vunpack.c.l.b16 %v357
    %v394 = vunpack.c.l.b16 %v358
    %v395 = vunpack.c.l.b16 %v359
    %v396 = vunpack.c.l.b16 %v360
    %v397 = vunpack.c.l.b16 %v361
    %v398 = vpack.c.b16 %v383, %v382
    %v399 = vpack.c.b16 %v385, %v384
    %v400 = vpack.c.b16 %v387, %v386
    %v401 = vpack.c.b16 %v389, %v388
    %v402 = vpack.c.b16 %v391, %v390
    %v403 = vpack.c.b16 %v393, %v392
    %v404 = vpack.c.b16 %v395, %v394
    %v405 = vpack.c.b16 %v397, %v396
    %414 = vmatpush.bf16.msra.mxu0 %v405
    %415 = vmatpush.bf16.msra.mxu0 %v404
    %416 = vmatpush.bf16.msra.mxu0 %v403
    %417 = vmatpush.bf16.msra.mxu0 %v402
    %418 = vmatpush.bf16.msra.mxu0 %v401
    %419 = vmatpush.bf16.msra.mxu0 %v400
    %420 = vmatpush.bf16.msra.mxu0 %v399
    %421 = vmatpush.bf16.msra.mxu0 %v398
    %422 = vmatmul.bf16.gmra.mxu0 %v345
    %v423 = vpop.f32.mrf.mxu0
    %v424 = vadd.f32 %v364, %v423
    %v425 = vpop.f32.mrf.mxu0
    %426 = vdwg.mxu0
    %427 = vst [vmem:[#allocation11] sm:$0xff] %v424
    // Predicated region
    $region58: #{tpu_custom_call.1} parent=1 // pred_check
      _
    $region59: #{tpu_custom_call.1} parent=1 // pred_check_branch
      %429 = sbr.rel (0) target = $region61
    $region60: #{tpu_custom_call.1} parent=1 // pred_region
      %431 = vsyncadd [#allocation4], 0
      %s433 = sshll.u32 [#allocation11], 4
      %s434 = int_to_ptr.vmem [resolvable:$true] %s433
      %s435 = sshll.u32 %s9, 4
      %s436 = int_to_ptr.hbm [resolvable:$true] %s435
      %438 = dma.vmem_to_hbm [thread:$0]  %s434, 128, %s436, [#allocation4]
    $region61: #{tpu_custom_call.1} parent=1 // pred_fallthru
      _
    // Predicated region
    $region62: #{tpu_custom_call.1} parent=1 // pred_check
      _
    $region63: #{tpu_custom_call.1} parent=1 // pred_check_branch
      %440 = sbr.rel (0) target = $region65
    $region64: #{tpu_custom_call.1} parent=1 // pred_region
      %442 = dma.done [#allocation4], 128
    $region65: #{tpu_custom_call.1} parent=1 // pred_fallthru
      _
    %443 = vsyncpa [#allocation3], 1
    %444 = vsyncpa [#allocation6], 1
    %445 = vsyncpa [#allocation9], 1
    %446 = vsyncpa [#allocation4], 1

// kernel: tpu_custom_call.1
$region0: #{tpu_custom_call.1}
  #allocation0 [shape = 'u32[]', space=smem, size = 0x4, offset = 0x4, fixed_abs, tag = 'smem constant byte address 0x4 - core index']
  #allocation1 [shape = 'u32[72,128]{1,0:T(1,128)}', space=vmem, size = 0x9000, scoped, tag = 'internal scratch']
  %s0 = inlined_call_operand.hbm [shape: f32[8,16], index: 0, kind: input, shape index: {}]
  %s1 = inlined_call_operand.hbm [shape: bf16[16,128], index: 1, kind: input, shape index: {}]
  %s2 = inlined_call_operand.vmem [shape: f32[1,128], index: 2, kind: input, shape index: {}]
  %s3 = inlined_call_operand.hbm [shape: bf16[128,128], index: 3, kind: input, shape index: {}]
  %s4 = inlined_call_operand.vmem [shape: f32[1,128], index: 4, kind: input, shape index: {}]
  %s5 = inlined_call_operand.hbm [shape: bf16[128,128], index: 5, kind: input, shape index: {}]
  %s6 = inlined_call_operand.vmem [shape: f32[1,128], index: 6, kind: input, shape index: {}]
  %s7 = inlined_call_operand.hbm [shape: bf16[128,128], index: 7, kind: input, shape index: {}]
  %s8 = inlined_call_operand.vmem [shape: f32[1,128], index: 8, kind: input, shape index: {}]
  %s9 = inlined_call_operand.hbm [shape: f32[8,128], index: 9, kind: output, shape index: {}]
  %s10 = sld [smem:[#allocation0]]
  $region66: #{tpu_custom_call.1} parent=0
    _
  %s12 = ssub.s32 1, %s10
  %s13 = scalar_select 0, %s12, %s10
  $region1: #{tpu_custom_call.1} parent=0
    #allocation2 [shape = 'u8[4096]{0}', space=vmem, size = 0x1000, scoped, tag = 'input window, operand 0, single buffered']
    #allocation3 [shape = 's32[1]{0}', space=sflag, size = 0x4, scoped, tag = 'scoped memory for tpu_custom_call.1']
    #allocation4 [shape = 's32[1]{0}', space=sflag, size = 0x4, scoped, tag = 'scoped memory for tpu_custom_call.1']
    #allocation5 [shape = 'u8[4096]{0}', space=vmem, size = 0x1000, scoped, tag = 'input window, operand 1, single buffered']
    #allocation6 [shape = 's32[1]{0}', space=sflag, size = 0x4, scoped, tag = 'scoped memory for tpu_custom_call.1']
    #allocation7 [shape = 'u8[32768]{0}', space=vmem, size = 0x8000, scoped, tag = 'input window, operand 3, single buffered']
    #allocation8 [shape = 'u8[32768]{0}', space=vmem, size = 0x8000, scoped, tag = 'input window, operand 5, single buffered']
    #allocation9 [shape = 's32[1]{0}', space=sflag, size = 0x4, scoped, tag = 'scoped memory for tpu_custom_call.1']
    #allocation10 [shape = 'u8[32768]{0}', space=vmem, size = 0x8000, scoped, tag = 'input window, operand 7, single buffered']
    #allocation11 [shape = 'u8[4096]{0}', space=vmem, size = 0x1000, scoped, tag = 'output window, operand 0, single buffered']
    %14 = vsyncpa [#allocation3], 0
    %15 = vsyncpa [#allocation6], 0
    %16 = vsyncpa [#allocation9], 0
    %17 = vsyncpa [#allocation4], 0
    // Predicated region
    $region2: #{tpu_custom_call.1} parent=1 // pred_check
      _
    $region3: #{tpu_custom_call.1} parent=1 // pred_check_branch
      %19 = sbr.rel (0) target = $region5
    $region4: #{tpu_custom_call.1} parent=1 // pred_region
      %21 = vsyncadd [#allocation3], 0
      %s23 = sshll.u32 %s0, 4
      %s24 = int_to_ptr.hbm [resolvable:$true] %s23
      %s25 = sshll.u32 [#allocation2], 4
      %s26 = int_to_ptr.vmem [resolvable:$true] %s25
      %28 = dma.hbm_to_vmem [thread:$0]  %s24, 128, %s26, [#allocation3]
    $region5: #{tpu_custom_call.1} parent=1 // pred_fallthru
      _
    // Predicated region
    $region6: #{tpu_custom_call.1} parent=1 // pred_check
      _
    $region7: #{tpu_custom_call.1} parent=1 // pred_check_branch
      %30 = sbr.rel (0) target = $region9
    $region8: #{tpu_custom_call.1} parent=1 // pred_region
      %32 = vsyncadd [#allocation6], 0
      %s33 = sshll.u32 %s1, 4
      %s34 = int_to_ptr.hbm [resolvable:$true] %s33
      %s35 = sshll.u32 [#allocation5], 4
      %s36 = int_to_ptr.vmem [resolvable:$true] %s35
      %41 = dma.hbm_to_vmem [thread:$0]  %s34, 128, %s36, [#allocation6], 64, 64, 4
    $region9: #{tpu_custom_call.1} parent=1 // pred_fallthru
      _
    // Predicated region
    $region10: #{tpu_custom_call.1} parent=1 // pred_check
      _
    $region11: #{tpu_custom_call.1} parent=1 // pred_check_branch
      %43 = sbr.rel (0) target = $region13
    $region12: #{tpu_custom_call.1} parent=1 // pred_region
      _
    $region13: #{tpu_custom_call.1} parent=1 // pred_fallthru
      _
    // Predicated region
    $region14: #{tpu_custom_call.1} parent=1 // pred_check
      _
    $region15: #{tpu_custom_call.1} parent=1 // pred_check_branch
      %45 = sbr.rel (0) target = $region17
    $region16: #{tpu_custom_call.1} parent=1 // pred_region
      %47 = vsyncadd [#allocation6], 0
      %s48 = sshll.u32 %s3, 4
      %s49 = int_to_ptr.hbm [resolvable:$true] %s48
      %s50 = sshll.u32 [#allocation7], 4
      %s51 = int_to_ptr.vmem [resolvable:$true] %s50
      %56 = dma.hbm_to_vmem [thread:$0]  %s49, 1024, %s51, [#allocation6], 64, 64, 4
    $region17: #{tpu_custom_call.1} parent=1 // pred_fallthru
      _
    // Predicated region
    $region18: #{tpu_custom_call.1} parent=1 // pred_check
      _
    $region19: #{tpu_custom_call.1} parent=1 // pred_check_branch
      %58 = sbr.rel (0) target = $region21
    $region20: #{tpu_custom_call.1} parent=1 // pred_region
      _
    $region21: #{tpu_custom_call.1} parent=1 // pred_fallthru
      _
    // Predicated region
    $region22: #{tpu_custom_call.1} parent=1 // pred_check
      _
    $region23: #{tpu_custom_call.1} parent=1 // pred_check_branch
      %60 = sbr.rel (0) target = $region25
    $region24: #{tpu_custom_call.1} parent=1 // pred_region
      %62 = vsyncadd [#allocation9], 0
      %s63 = sshll.u32 %s5, 4
      %s64 = int_to_ptr.hbm [resolvable:$true] %s63
      %s65 = sshll.u32 [#allocation8], 4
      %s66 = int_to_ptr.vmem [resolvable:$true] %s65
      %71 = dma.hbm_to_vmem [thread:$0]  %s64, 1024, %s66, [#allocation9], 64, 64, 4
    $region25: #{tpu_custom_call.1} parent=1 // pred_fallthru
      _
    // Predicated region
    $region26: #{tpu_custom_call.1} parent=1 // pred_check
      _
    $region27: #{tpu_custom_call.1} parent=1 // pred_check_branch
      %73 = sbr.rel (0) target = $region29
    $region28: #{tpu_custom_call.1} parent=1 // pred_region
      _
    $region29: #{tpu_custom_call.1} parent=1 // pred_fallthru
      _
    // Predicated region
    $region30: #{tpu_custom_call.1} parent=1 // pred_check
      _
    $region31: #{tpu_custom_call.1} parent=1 // pred_check_branch
      %75 = sbr.rel (0) target = $region33
    $region32: #{tpu_custom_call.1} parent=1 // pred_region
      %77 = vsyncadd [#allocation9], 0
      %s78 = sshll.u32 %s7, 4
      %s79 = int_to_ptr.hbm [resolvable:$true] %s78
      %s80 = sshll.u32 [#allocation10], 4
      %s81 = int_to_ptr.vmem [resolvable:$true] %s80
      %86 = dma.hbm_to_vmem [thread:$0]  %s79, 1024, %s81, [#allocation9], 64, 64, 4
    $region33: #{tpu_custom_call.1} parent=1 // pred_fallthru
      _
    // Predicated region
    $region34: #{tpu_custom_call.1} parent=1 // pred_check
      _
    $region35: #{tpu_custom_call.1} parent=1 // pred_check_branch
      %88 = sbr.rel (0) target = $region37
    $region36: #{tpu_custom_call.1} parent=1 // pred_region
      _
    $region37: #{tpu_custom_call.1} parent=1 // pred_fallthru
      _
    // Predicated region
    $region38: #{tpu_custom_call.1} parent=1 // pred_check
      _
    $region39: #{tpu_custom_call.1} parent=1 // pred_check_branch
      %90 = sbr.rel (0) target = $region41
    $region40: #{tpu_custom_call.1} parent=1 // pred_region
      %92 = dma.done [#allocation3], 128
    $region41: #{tpu_custom_call.1} parent=1 // pred_fallthru
      _
    // Predicated region
    $region42: #{tpu_custom_call.1} parent=1 // pred_check
      _
    $region43: #{tpu_custom_call.1} parent=1 // pred_check_branch
      %94 = sbr.rel (0) target = $region45
    $region44: #{tpu_custom_call.1} parent=1 // pred_region
      %96 = dma.done [#allocation6], 128
    $region45: #{tpu_custom_call.1} parent=1 // pred_fallthru
      _
    // Predicated region
    $region46: #{tpu_custom_call.1} parent=1 // pred_check
      _
    $region47: #{tpu_custom_call.1} parent=1 // pred_check_branch
      %98 = sbr.rel (0) target = $region49
    $region48: #{tpu_custom_call.1} parent=1 // pred_region
      %100 = dma.done [#allocation6], 1024
    $region49: #{tpu_custom_call.1} parent=1 // pred_fallthru
      _
    // Predicated region
    $region50: #{tpu_custom_call.1} parent=1 // pred_check
      _
    $region51: #{tpu_custom_call.1} parent=1 // pred_check_branch
      %102 = sbr.rel (0) target = $region53
    $region52: #{tpu_custom_call.1} parent=1 // pred_region
      %104 = dma.done [#allocation9], 1024
    $region53: #{tpu_custom_call.1} parent=1 // pred_fallthru
      _
    // Predicated region
    $region54: #{tpu_custom_call.1} parent=1 // pred_check
      _
    $region55: #{tpu_custom_call.1} parent=1 // pred_check_branch
      %106 = sbr.rel (0) target = $region57
    $region56: #{tpu_custom_call.1} parent=1 // pred_region
      %108 = dma.done [#allocation9], 1024
    $region57: #{tpu_custom_call.1} parent=1 // pred_fallthru
      _
    %v110 = vld [vmem:[#allocation2] sm:$0xff]
    %v111 = vpack.c.bf16 %v110, %v110
    %v112 = vld [vmem:[#allocation5] sm:$0xf]
    %v113 = vld [vmem:[#allocation5 + $0x4] sm:$0xf]
    %v114 = vld [vmem:[%s2] sm:$0x1]
    %v116 = vperm.slane %v114, 0
    %v120 = vunpack.c.l.b16 %v112
    %v121 = vunpack.c.l.b16 %v113
    %v122 = vpack.c.b16 %v121, %v120
    %vm124 = vcmask 130048
    %v126 = vsel %vm124, %v111, 0
    %128 = vmatpush.bf16.msra.mxu0 0
    %129 = vmatpush.bf16.msra.mxu0 0
    %130 = vmatpush.bf16.msra.mxu0 0
    %131 = vmatpush.bf16.msra.mxu0 0
    %132 = vmatpush.bf16.msra.mxu0 0
    %133 = vmatpush.bf16.msra.mxu0 0
    %134 = vmatpush.bf16.msra.mxu0 0
    %135 = vmatpush.bf16.msra.mxu0 %v122
    %136 = vmatmul.bf16.gmra.mxu0 %v126
    %v137 = vpop.f32.mrf.mxu0
    %v138 = vadd.f32 %v116, %v137
    %v139 = vpop.f32.mrf.mxu0
    %140 = vdwg.mxu0
    %v141 = vxor.u32 %v138, 2147483648
    %v142 = vmul.f32 %v141, 1.442695
    %v143 = vpow.pop %v142
    %v144 = vadd.f32 %v143, 1.0
    %v145 = vrcp.pop %v144
    %v146 = vmul.f32 %v144, %v145
    %v147 = vsub.f32 1.0, %v146
    %v148 = vmul.f32 %v145, %v147
    %v149 = vadd.f32 %v145, %v148
    %vm150 = vweird.f32 %v144
    %vm151 = vweird.f32 %v145
    %vm152 = vmor %vm150, %vm151
    %v153 = vsel %vm152, %v145, %v149
    %v154 = vand.u32 2147483647, %v144
    %vm155 = vcmp.eq.f32.partialorder %v154, 8.507059e+37
    %v156 = vand.u32 %v144, 2147483648
    %v157 = vor.u32 1.1754944e-38, %v156
    %v158 = vsel %vm155, %v157, %v153
    %v159 = vmul.f32 1.0, %v158
    %v160 = vmul.f32 %v138, %v159
    %v161 = vpack.c.bf16 %v160, %v160
    %v162 = vld [vmem:[#allocation7] sm:$0xf]
    %v163 = vld [vmem:[#allocation7 + $0x4] sm:$0xf]
    %v164 = vld [vmem:[#allocation7 + $0x8] sm:$0xf]
    %v165 = vld [vmem:[#allocation7 + $0xc] sm:$0xf]
    %v166 = vld [vmem:[#allocation7 + $0x10] sm:$0xf]
    %v167 = vld [vmem:[#allocation7 + $0x14] sm:$0xf]
    %v168 = vld [vmem:[#allocation7 + $0x18] sm:$0xf]
    %v169 = vld [vmem:[#allocation7 + $0x1c] sm:$0xf]
    %v170 = vld [vmem:[#allocation7 + $0x20] sm:$0xf]
    %v171 = vld [vmem:[#allocation7 + $0x24] sm:$0xf]
    %v172 = vld [vmem:[#allocation7 + $0x28] sm:$0xf]
    %v173 = vld [vmem:[#allocation7 + $0x2c] sm:$0xf]
    %v174 = vld [vmem:[#allocation7 + $0x30] sm:$0xf]
    %v175 = vld [vmem:[#allocation7 + $0x34] sm:$0xf]
    %v176 = vld [vmem:[#allocation7 + $0x38] sm:$0xf]
    %v177 = vld [vmem:[#allocation7 + $0x3c] sm:$0xf]
    %v178 = vld [vmem:[%s4] sm:$0x1]
    %v180 = vperm.slane %v178, 0
    %v198 = vunpack.c.l.b16 %v162
    %v199 = vunpack.c.l.b16 %v163
    %v200 = vunpack.c.l.b16 %v164
    %v201 = vunpack.c.l.b16 %v165
    %v202 = vunpack.c.l.b16 %v166
    %v203 = vunpack.c.l.b16 %v167
    %v204 = vunpack.c.l.b16 %v168
    %v205 = vunpack.c.l.b16 %v169
    %v206 = vunpack.c.l.b16 %v170
    %v207 = vunpack.c.l.b16 %v171
    %v208 = vunpack.c.l.b16 %v172
    %v209 = vunpack.c.l.b16 %v173
    %v210 = vunpack.c.l.b16 %v174
    %v211 = vunpack.c.l.b16 %v175
    %v212 = vunpack.c.l.b16 %v176
    %v213 = vunpack.c.l.b16 %v177
    %v214 = vpack.c.b16 %v199, %v198
    %v215 = vpack.c.b16 %v201, %v200
    %v216 = vpack.c.b16 %v203, %v202
    %v217 = vpack.c.b16 %v205, %v204
    %v218 = vpack.c.b16 %v207, %v206
    %v219 = vpack.c.b16 %v209, %v208
    %v220 = vpack.c.b16 %v211, %v210
    %v221 = vpack.c.b16 %v213, %v212
    %230 = vmatpush.bf16.msra.mxu0 %v221
    %231 = vmatpush.bf16.msra.mxu0 %v220
    %232 = vmatpush.bf16.msra.mxu0 %v219
    %233 = vmatpush.bf16.msra.mxu0 %v218
    %234 = vmatpush.bf16.msra.mxu0 %v217
    %235 = vmatpush.bf16.msra.mxu0 %v216
    %236 = vmatpush.bf16.msra.mxu0 %v215
    %237 = vmatpush.bf16.msra.mxu0 %v214
    %238 = vmatmul.bf16.gmra.mxu0 %v161
    %v239 = vpop.f32.mrf.mxu0
    %v240 = vadd.f32 %v180, %v239
    %v241 = vpop.f32.mrf.mxu0
    %242 = vdwg.mxu0
    %v243 = vpack.c.bf16 %v240, %v240
    %v244 = vld [vmem:[#allocation8] sm:$0xf]
    %v245 = vld [vmem:[#allocation8 + $0x4] sm:$0xf]
    %v246 = vld [vmem:[#allocation8 + $0x8] sm:$0xf]
    %v247 = vld [vmem:[#allocation8 + $0xc] sm:$0xf]
    %v248 = vld [vmem:[#allocation8 + $0x10] sm:$0xf]
    %v249 = vld [vmem:[#allocation8 + $0x14] sm:$0xf]
    %v250 = vld [vmem:[#allocation8 + $0x18] sm:$0xf]
    %v251 = vld [vmem:[#allocation8 + $0x1c] sm:$0xf]
    %v252 = vld [vmem:[#allocation8 + $0x20] sm:$0xf]
    %v253 = vld [vmem:[#allocation8 + $0x24] sm:$0xf]
    %v254 = vld [vmem:[#allocation8 + $0x28] sm:$0xf]
    %v255 = vld [vmem:[#allocation8 + $0x2c] sm:$0xf]
    %v256 = vld [vmem:[#allocation8 + $0x30] sm:$0xf]
    %v257 = vld [vmem:[#allocation8 + $0x34] sm:$0xf]
    %v258 = vld [vmem:[#allocation8 + $0x38] sm:$0xf]
    %v259 = vld [vmem:[#allocation8 + $0x3c] sm:$0xf]
    %v260 = vld [vmem:[%s6] sm:$0x1]
    %v262 = vperm.slane %v260, 0
    %v280 = vunpack.c.l.b16 %v244
    %v281 = vunpack.c.l.b16 %v245
    %v282 = vunpack.c.l.b16 %v246
    %v283 = vunpack.c.l.b16 %v247
    %v284 = vunpack.c.l.b16 %v248
    %v285 = vunpack.c.l.b16 %v249
    %v286 = vunpack.c.l.b16 %v250
    %v287 = vunpack.c.l.b16 %v251
    %v288 = vunpack.c.l.b16 %v252
    %v289 = vunpack.c.l.b16 %v253
    %v290 = vunpack.c.l.b16 %v254
    %v291 = vunpack.c.l.b16 %v255
    %v292 = vunpack.c.l.b16 %v256
    %v293 = vunpack.c.l.b16 %v257
    %v294 = vunpack.c.l.b16 %v258
    %v295 = vunpack.c.l.b16 %v259
    %v296 = vpack.c.b16 %v281, %v280
    %v297 = vpack.c.b16 %v283, %v282
    %v298 = vpack.c.b16 %v285, %v284
    %v299 = vpack.c.b16 %v287, %v286
    %v300 = vpack.c.b16 %v289, %v288
    %v301 = vpack.c.b16 %v291, %v290
    %v302 = vpack.c.b16 %v293, %v292
    %v303 = vpack.c.b16 %v295, %v294
    %312 = vmatpush.bf16.msra.mxu0 %v303
    %313 = vmatpush.bf16.msra.mxu0 %v302
    %314 = vmatpush.bf16.msra.mxu0 %v301
    %315 = vmatpush.bf16.msra.mxu0 %v300
    %316 = vmatpush.bf16.msra.mxu0 %v299
    %317 = vmatpush.bf16.msra.mxu0 %v298
    %318 = vmatpush.bf16.msra.mxu0 %v297
    %319 = vmatpush.bf16.msra.mxu0 %v296
    %320 = vmatmul.bf16.gmra.mxu0 %v243
    %v321 = vpop.f32.mrf.mxu0
    %v322 = vadd.f32 %v262, %v321
    %v323 = vpop.f32.mrf.mxu0
    %324 = vdwg.mxu0
    %v325 = vxor.u32 %v322, 2147483648
    %v326 = vmul.f32 %v325, 1.442695
    %v327 = vpow.pop %v326
    %v328 = vadd.f32 %v327, 1.0
    %v329 = vrcp.pop %v328
    %v330 = vmul.f32 %v328, %v329
    %v331 = vsub.f32 1.0, %v330
    %v332 = vmul.f32 %v329, %v331
    %v333 = vadd.f32 %v329, %v332
    %vm334 = vweird.f32 %v328
    %vm335 = vweird.f32 %v329
    %vm336 = vmor %vm334, %vm335
    %v337 = vsel %vm336, %v329, %v333
    %v338 = vand.u32 2147483647, %v328
    %vm339 = vcmp.eq.f32.partialorder %v338, 8.507059e+37
    %v340 = vand.u32 %v328, 2147483648
    %v341 = vor.u32 1.1754944e-38, %v340
    %v342 = vsel %vm339, %v341, %v337
    %v343 = vmul.f32 1.0, %v342
    %v344 = vmul.f32 %v322, %v343
    %v345 = vpack.c.bf16 %v344, %v344
    %v346 = vld [vmem:[#allocation10] sm:$0xf]
    %v347 = vld [vmem:[#allocation10 + $0x4] sm:$0xf]
    %v348 = vld [vmem:[#allocation10 + $0x8] sm:$0xf]
    %v349 = vld [vmem:[#allocation10 + $0xc] sm:$0xf]
    %v350 = vld [vmem:[#allocation10 + $0x10] sm:$0xf]
    %v351 = vld [vmem:[#allocation10 + $0x14] sm:$0xf]
    %v352 = vld [vmem:[#allocation10 + $0x18] sm:$0xf]
    %v353 = vld [vmem:[#allocation10 + $0x1c] sm:$0xf]
    %v354 = vld [vmem:[#allocation10 + $0x20] sm:$0xf]
    %v355 = vld [vmem:[#allocation10 + $0x24] sm:$0xf]
    %v356 = vld [vmem:[#allocation10 + $0x28] sm:$0xf]
    %v357 = vld [vmem:[#allocation10 + $0x2c] sm:$0xf]
    %v358 = vld [vmem:[#allocation10 + $0x30] sm:$0xf]
    %v359 = vld [vmem:[#allocation10 + $0x34] sm:$0xf]
    %v360 = vld [vmem:[#allocation10 + $0x38] sm:$0xf]
    %v361 = vld [vmem:[#allocation10 + $0x3c] sm:$0xf]
    %v362 = vld [vmem:[%s8] sm:$0x1]
    %v364 = vperm.slane %v362, 0
    %v382 = vunpack.c.l.b16 %v346
    %v383 = vunpack.c.l.b16 %v347
    %v384 = vunpack.c.l.b16 %v348
    %v385 = vunpack.c.l.b16 %v349
    %v386 = vunpack.c.l.b16 %v350
    %v387 = vunpack.c.l.b16 %v351
    %v388 = vunpack.c.l.b16 %v352
    %v389 = vunpack.c.l.b16 %v353
    %v390 = vunpack.c.l.b16 %v354
    %v391 = vunpack.c.l.b16 %v355
    %v392 = vunpack.c.l.b16 %v356
    %v393 = vunpack.c.l.b16 %v357
    %v394 = vunpack.c.l.b16 %v358
    %v395 = vunpack.c.l.b16 %v359
    %v396 = vunpack.c.l.b16 %v360
    %v397 = vunpack.c.l.b16 %v361
    %v398 = vpack.c.b16 %v383, %v382
    %v399 = vpack.c.b16 %v385, %v384
    %v400 = vpack.c.b16 %v387, %v386
    %v401 = vpack.c.b16 %v389, %v388
    %v402 = vpack.c.b16 %v391, %v390
    %v403 = vpack.c.b16 %v393, %v392
    %v404 = vpack.c.b16 %v395, %v394
    %v405 = vpack.c.b16 %v397, %v396
    %414 = vmatpush.bf16.msra.mxu0 %v405
    %415 = vmatpush.bf16.msra.mxu0 %v404
    %416 = vmatpush.bf16.msra.mxu0 %v403
    %417 = vmatpush.bf16.msra.mxu0 %v402
    %418 = vmatpush.bf16.msra.mxu0 %v401
    %419 = vmatpush.bf16.msra.mxu0 %v400
    %420 = vmatpush.bf16.msra.mxu0 %v399
    %421 = vmatpush.bf16.msra.mxu0 %v398
    %422 = vmatmul.bf16.gmra.mxu0 %v345
    %v423 = vpop.f32.mrf.mxu0
    %v424 = vadd.f32 %v364, %v423
    %v425 = vpop.f32.mrf.mxu0
    %426 = vdwg.mxu0
    %427 = vst [vmem:[#allocation11] sm:$0xff] %v424
    // Predicated region
    $region58: #{tpu_custom_call.1} parent=1 // pred_check
      _
    $region59: #{tpu_custom_call.1} parent=1 // pred_check_branch
      %429 = sbr.rel (0) target = $region61
    $region60: #{tpu_custom_call.1} parent=1 // pred_region
      %431 = vsyncadd [#allocation4], 0
      %s433 = sshll.u32 [#allocation11], 4
      %s434 = int_to_ptr.vmem [resolvable:$true] %s433
      %s435 = sshll.u32 %s9, 4
      %s436 = int_to_ptr.hbm [resolvable:$true] %s435
      %438 = dma.vmem_to_hbm [thread:$0]  %s434, 128, %s436, [#allocation4]
    $region61: #{tpu_custom_call.1} parent=1 // pred_fallthru
      _
    // Predicated region
    $region62: #{tpu_custom_call.1} parent=1 // pred_check
      _
    $region63: #{tpu_custom_call.1} parent=1 // pred_check_branch
      %440 = sbr.rel (0) target = $region65
    $region64: #{tpu_custom_call.1} parent=1 // pred_region
      %442 = dma.done [#allocation4], 128
    $region65: #{tpu_custom_call.1} parent=1 // pred_fallthru
      _
    %443 = vsyncpa [#allocation3], 1
    %444 = vsyncpa [#allocation6], 1
    %445 = vsyncpa [#allocation9], 1
    %446 = vsyncpa [#allocation4], 1

</llo_original>
